<compile_context>
chip_gen: v7x
topology: tpu7x:2x2x1
jax: 0.10.0
libtpu: 0.0.40
codegen_flags: <defaults>
</compile_context>

<pallas_src>
import numpy as np
import jax
import jax.numpy as jnp
from jax.experimental import pallas as pl
from jax.experimental.pallas import tpu as pltpu


def _round_up(v, m):
    return ((v + m - 1) // m) * m


def _sublane_multiple(dtype):
    # Native sublane packing: f32 -> 8, bf16/f16 -> 16, int8/fp8 -> 32.
    return 8 * max(1, 4 // jnp.dtype(dtype).itemsize)


def _vmem_budget():
    """(block-buffer byte budget, vmem_limit_bytes), generation-aware."""
    vmem_cap = 64 * 1024 * 1024
    try:
        vmem_cap = int(pltpu.get_tpu_info().vmem_capacity_bytes)
    except Exception:
        pass
    if vmem_cap >= 100 * 1024 * 1024:            # v5e / v6e: 128 MiB physical VMEM
        return 24 * 1024 * 1024, 64 * 1024 * 1024
    return 10 * 1024 * 1024, 32 * 1024 * 1024    # v7x: 64 MiB physical, 32 scoped


def _pick_rows(budget_bytes, per_row_bytes, total_rows, hbm_row_bytes, sub,
               max_block_rows):
    """Block-row count from a VMEM byte budget (x2 for double buffering)."""
    t = (budget_bytes // (2 * per_row_bytes) // sub) * sub
    t = max(sub, t)
    if max_block_rows is not None:                       # test hook only
        t = min(t, max(sub, (max_block_rows // sub) * sub))
    # Keep >= 4 grid steps on large problems so the "parallel" axis can be
    # sharded across v7x's two TensorCores, but never shrink a tile below
    # ~1 MiB of streamed data where the ~0.35us/step overhead would dominate.
    quarter = _round_up(max(1, -(-total_rows // 4)), sub)
    if quarter * hbm_row_bytes >= (1 << 20):
        t = min(t, quarter)
    if t >= total_rows:
        t = total_rows                                   # full-dim block (legal)
    return t


def _fma_rowscale_kernel(cs_ref, ch_ref, x_ref, o_ref):
    # cs/ch: (T, 1) f32 per-atom combined scale/shift; x/o: (T, F).
    x = x_ref[...].astype(jnp.float32)
    o_ref[...] = (cs_ref[...] * x + ch_ref[...]).astype(o_ref.dtype)


def _fma_lanedense_kernel(cs_ref, ch_ref, e_ref, x_ref, o_ref):
    # cs/ch: (T, GPR) per-atom values; e: (GPR, LW) constant 0/1 expansion
    # matrix (column l selects atom l // F).  The MXU is otherwise idle in this
    # kernel, so the per-atom -> per-element broadcast rides on it for free;
    # HIGHEST precision keeps the f32 values exact (pure selection vs 0/1).
    e = e_ref[...]
    scale = jnp.dot(cs_ref[...], e, precision=jax.lax.Precision.HIGHEST,
                    preferred_element_type=jnp.float32)            # (T, LW)
    shift = jnp.dot(ch_ref[...], e, precision=jax.lax.Precision.HIGHEST,
                    preferred_element_type=jnp.float32)            # (T, LW)
    x = x_ref[...].astype(jnp.float32)
    o_ref[...] = (scale * x + shift).astype(o_ref.dtype)


def atomic_scale_shift(x, species, factors, scale_params, shift_params,
                       *, max_block_rows=None):
    """x: (N, F); species: (N,) int; factors/scale_params/shift_params: (S,).

    max_block_rows is a test hook to force multi-step grids on tiny inputs.
    """
    n, f = x.shape
    out_dtype = x.dtype
    itemsize = jnp.dtype(out_dtype).itemsize
    sub = _sublane_multiple(out_dtype)
    budget, vmem_limit = _vmem_budget()

    # Fold the constant `factors` buffer into both tables (tiny (S,) math):
    #   factors * (scale * x + shift) == (factors*scale) * x + (factors*shift)
    comb_scale = factors.astype(jnp.float32) * scale_params.astype(jnp.float32)
    comb_shift = factors.astype(jnp.float32) * shift_params.astype(jnp.float32)

    # Hoist the species gather out of the kernel: removes all one-hot VPU/XLU
    # work and the lane-padded species tile from VMEM.  Extra HBM traffic is
    # only ~20 bytes/atom vs. the 2*F*itemsize main stream.
    sp = species.astype(jnp.int32)
    cs = comb_scale[sp]                                  # (N,) f32
    ch = comb_shift[sp]                                  # (N,) f32

    # ---------------- Lane-dense fast path for small F ----------------------
    lane_w = 0
    if 0 < f < 128 and 128 % f == 0:
        for cand in (512, 256, 128):
            gpr_c = cand // f                            # atoms per lane-row
            if (cand == 128 or gpr_c <= 64) and n % gpr_c == 0 and n // gpr_c > 0:
                lane_w = cand
                break

    if lane_w:
        gpr = lane_w // f
        rows = n // gpr                                  # == n * f // lane_w
        xl = x.reshape(rows, lane_w)                     # contiguous -> free view
        csl = cs.reshape(rows, gpr)
        chl = ch.reshape(rows, gpr)
        # Constant 0/1 expansion matrix: E[g, l] = (l // F == g).
        e = (jnp.arange(lane_w, dtype=jnp.int32)[None, :] // f
             == jnp.arange(gpr, dtype=jnp.int32)[:, None]).astype(jnp.float32)

        per_row = (2 * lane_w * itemsize                 # x + out tiles
                   + 2 * _round_up(gpr, 128) * 4)        # cs + ch (lane-padded)
        t = _pick_rows(budget, per_row, rows, lane_w * itemsize, sub,
                       max_block_rows)
        grid = (pl.cdiv(rows, t),)

        out = pl.pallas_call(
            _fma_lanedense_kernel,
            out_shape=jax.ShapeDtypeStruct((rows, lane_w), out_dtype),
            grid=grid,
            in_specs=[
                pl.BlockSpec((t, gpr), lambda i: (i, 0)),
                pl.BlockSpec((t, gpr), lambda i: (i, 0)),
                pl.BlockSpec((gpr, lane_w), lambda i: (0, 0)),   # resident
                pl.BlockSpec((t, lane_w), lambda i: (i, 0)),
            ],
            out_specs=pl.BlockSpec((t, lane_w), lambda i: (i, 0)),
            compiler_params=pltpu.CompilerParams(
                dimension_semantics=("parallel",),
                vmem_limit_bytes=vmem_limit),
        )(csl, chl, e, xl)
        return out.reshape(n, f)

    # ------------- General path (any F/N; ragged last block masked) ---------
    # TODO(synk): N not divisible by 128/F falls through here even for tiny F,
    # keeping masked (F<128-lane) stores; a lane-dense body plus a tiny tail
    # call would recover the full-width store path in that case too.
    cs2 = cs.reshape(n, 1)
    ch2 = ch.reshape(n, 1)
    per_row = (2 * _round_up(f, 128) * itemsize          # x + out (lane-padded)
               + 2 * 128 * 4)                            # cs + ch (lane-padded)
    t = _pick_rows(budget, per_row, n, f * itemsize, sub, max_block_rows)
    grid = (pl.cdiv(n, t),)

    out = pl.pallas_call(
        _fma_rowscale_kernel,
        out_shape=jax.ShapeDtypeStruct((n, f), out_dtype),
        grid=grid,
        in_specs=[
            pl.BlockSpec((t, 1), lambda i: (i, 0)),
            pl.BlockSpec((t, 1), lambda i: (i, 0)),
            pl.BlockSpec((t, f), lambda i: (i, 0)),
        ],
        out_specs=pl.BlockSpec((t, f), lambda i: (i, 0)),
        compiler_params=pltpu.CompilerParams(
            dimension_semantics=("parallel",),
            vmem_limit_bytes=vmem_limit),
    )(cs2, ch2, x)
    return out


def _reference(x, species, factors, scale_params, shift_params):
    f_sp = factors[species][:, None]
    sc_sp = scale_params[species][:, None]
    sh_sp = shift_params[species][:, None]
    return f_sp * (sc_sp * x + sh_sp)


def _make_params(S):
    # Mirrors AtomicScaleShift.__init__:
    #   factors       = input scale_params buffer
    #   scale_params  = ones (nn.Parameter)
    #   shift_params  = input shift_params / factors
    scale_in = np.linspace(0.5, 2.0, S).astype(np.float32)
    shift_in = np.linspace(-1.0, 1.0, S).astype(np.float32)
    factors = jnp.asarray(scale_in)
    scale_params = jnp.ones((S,), dtype=jnp.float32)
    shift_params = jnp.asarray(shift_in) / factors
    return factors, scale_params, shift_params


if __name__ == "__main__":
    key = jax.random.PRNGKey(0)
    k1, k2, k3, k4 = jax.random.split(key, 4)

    # --- Test A: general path (F=10 is not a divisor of 128), ragged grid ---
    N_a, F_a, S_a = 19, 10, 4
    fa, sca, sha = _make_params(S_a)
    x_a = jax.random.normal(k1, (N_a, F_a), dtype=jnp.float32)
    sp_a = jax.random.randint(k2, (N_a,), 0, S_a, dtype=jnp.int32)
    out_a = atomic_scale_shift(x_a, sp_a, fa, sca, sha, max_block_rows=8)
    out_a = jax.block_until_ready(out_a)
    ref_a = _reference(x_a, sp_a, fa, sca, sha)
    assert np.allclose(np.asarray(out_a), np.asarray(ref_a), rtol=1e-5, atol=1e-6)

    # --- Test B: lane-dense fast path (F=8, N divisible), multi-step grid ---
    N_b, F_b, S_b = 2048, 8, 5
    fb, scb, shb = _make_params(S_b)
    x_b = jax.random.normal(k3, (N_b, F_b), dtype=jnp.float32)
    sp_b = jax.random.randint(k4, (N_b,), 0, S_b, dtype=jnp.int32)
    out_b = atomic_scale_shift(x_b, sp_b, fb, scb, shb, max_block_rows=8)
    out_b = jax.block_until_ready(out_b)
    ref_b = _reference(x_b, sp_b, fb, scb, shb)
    assert np.allclose(np.asarray(out_b), np.asarray(ref_b), rtol=1e-5, atol=1e-6)

    print("KERNEL_OK")
</pallas_src>

<mosaic_0001>
module attributes {stable_mosaic.version = 11 : i64} {
  func.func @_fma_rowscale_kernel(%arg0: i32, %arg1: memref<8x1xf32, #tpu.memory_space<vmem>>, %arg2: memref<8x1xf32, #tpu.memory_space<vmem>>, %arg3: memref<8x10xf32, #tpu.memory_space<vmem>>, %arg4: memref<8x10xf32, #tpu.memory_space<vmem>>) attributes {dimension_semantics = [#tpu.dimension_semantics<parallel>], iteration_bounds = array<i64: 3>, scalar_prefetch = 0 : i64, scratch_operands = 0 : i64, tpu.core_type = #tpu.core_type<tc>, window_params = [{transform_indices = @transform_0, window_bounds = array<i64: 8, 1>}, {transform_indices = @transform_1, window_bounds = array<i64: 8, 1>}, {transform_indices = @transform_2, window_bounds = array<i64: 8, 10>}, {transform_indices = @transform_3, window_bounds = array<i64: 8, 10>}]} {
    %c0 = arith.constant 0 : index
    %c0_0 = arith.constant 0 : index
    %0 = vector.load %arg3[%c0, %c0_0] : memref<8x10xf32, #tpu.memory_space<vmem>>, vector<8x10xf32>
    %c0_1 = arith.constant 0 : index
    %c0_2 = arith.constant 0 : index
    %1 = vector.load %arg1[%c0_1, %c0_2] : memref<8x1xf32, #tpu.memory_space<vmem>>, vector<8x1xf32>
    %2 = vector.broadcast %1 : vector<8x1xf32> to vector<8x10xf32>
    %3 = arith.mulf %2, %0 : vector<8x10xf32>
    %c0_3 = arith.constant 0 : index
    %c0_4 = arith.constant 0 : index
    %4 = vector.load %arg2[%c0_3, %c0_4] : memref<8x1xf32, #tpu.memory_space<vmem>>, vector<8x1xf32>
    %5 = vector.broadcast %4 : vector<8x1xf32> to vector<8x10xf32>
    %6 = arith.addf %3, %5 : vector<8x10xf32>
    %c0_5 = arith.constant 0 : index
    %c0_6 = arith.constant 0 : index
    %7 = vector.load %arg4[%c0_5, %c0_6] : memref<8x10xf32, #tpu.memory_space<vmem>>, vector<8x10xf32>
    tpu.vector_store %arg4[%c0_5, %c0_6], %6 {strides = array<i32>} : memref<8x10xf32, #tpu.memory_space<vmem>>, vector<8x10xf32>,
    return
  }
  func.func @transform_0(%arg0: i32) -> (i32, i32) {
    %c0_i32 = arith.constant 0 : i32
    %c0_i32_0 = arith.constant 0 : i32
    return %arg0, %c0_i32 : i32, i32
  }
  func.func @transform_1(%arg0: i32) -> (i32, i32) {
    %c0_i32 = arith.constant 0 : i32
    %c0_i32_0 = arith.constant 0 : i32
    return %arg0, %c0_i32 : i32, i32
  }
  func.func @transform_2(%arg0: i32) -> (i32, i32) {
    %c0_i32 = arith.constant 0 : i32
    %c0_i32_0 = arith.constant 0 : i32
    return %arg0, %c0_i32 : i32, i32
  }
  func.func @transform_3(%arg0: i32) -> (i32, i32) {
    %c0_i32 = arith.constant 0 : i32
    %c0_i32_0 = arith.constant 0 : i32
    return %arg0, %c0_i32 : i32, i32
  }
}

</mosaic_0001>

<llo_original>
// kernel: tpu_custom_call.1
$region0: #{tpu_custom_call.1}
  #allocation0 [shape = 'u32[]', space=smem, size = 0x4, offset = 0x4, fixed_abs, tag = 'smem constant byte address 0x4 - core index']
  #allocation1 [shape = 'u32[144,128]{1,0:T(1,128)}', space=vmem, size = 0x12000, scoped, tag = 'internal scratch']
  %s0 = inlined_call_operand.vmem [shape: f32[19,1], index: 0, kind: input, shape index: {}]
  %s1 = inlined_call_operand.vmem [shape: f32[19,1], index: 1, kind: input, shape index: {}]
  %s2 = inlined_call_operand.vmem [shape: f32[19,10], index: 2, kind: input, shape index: {}]
  %s3 = inlined_call_operand.vmem [shape: f32[19,10], index: 3, kind: output, shape index: {}]
  %s4 = sld [smem:[#allocation0]]
  $region45: #{tpu_custom_call.1} parent=0
    _
  %s6 = ssub.s32 1, %s4
  %s7 = scalar_select 0, %s6, %s4
  loop: start=0, step=1, limit=5
  $region2: #{tpu_custom_call.1} parent=0 // loop_pre_header
    _
  $region3: #{tpu_custom_call.1} parent=0 // loop_header
    %s9 = sphi 0, %s13
    %p10 = scmp.ge.s32.totalorder %s9, 5
    %s19 = sphi 0, %s21
    %s22 = sphi 0, %s19
    %s23 = sphi 0, %s22
    %s39 = sphi 0, %s23
    %s45 = sphi 0, %s47
    %s48 = sphi 0, %s45
    %s49 = sphi 0, %s48
    %s65 = sphi 0, %s49
    %s71 = sphi 0, %s73
    %s74 = sphi 0, %s71
    %s75 = sphi 0, %s74
    %s91 = sphi 0, %s75
    %s97 = sphi 0, %s99
    %s100 = sphi 0, %s97
    %s101 = sphi 0, %s100
    %s117 = sphi 0, %s101
  $region4: #{tpu_custom_call.1} parent=0 // loop_header_branch
    %12 = sbr.rel (%p10) target = $region8
  $region5: #{tpu_custom_call.1} parent=0 // loop_body
    %s14 = ssub.s32 %s9, 1
    %s15 = ssub.s32 %s9, 2
    %s16 = sadd.s32 %s9, 1
    %s17 = ssub.s32 %s9, %s16
    %p18 = scmp.eq.s32.totalorder %s17, 0
    %s20 = sadd.s32 %s19, 1
    %s21 = scalar_select %p18, %s19, %s20
    %p24 = pneg %p18
    %p25 = scmp.eq.s32.totalorder %s9, 2
    %p26 = por %p24, %p25
    %p27 = scmp.ne.s32.totalorder %s19, %s22
    %p28 = scmp.eq.s32.totalorder %s9, 0
    %p29 = por %p27, %p28
    %p30 = scmp.ne.s32.totalorder %s19, %s22
    %p31 = scmp.eq.s32.totalorder %s14, 2
    %p32 = por %p30, %p31
    %p33 = scmp.ne.s32.totalorder %s22, %s23
    %p34 = scmp.eq.s32.totalorder %s14, 0
    %p35 = por %p33, %p34
    %p36 = scmp.ne.s32.totalorder %s22, %s23
    %p37 = scmp.eq.s32.totalorder %s15, 2
    %p38 = por %p36, %p37
    %p40 = scmp.ne.s32.totalorder %s23, %s39
    %p41 = scmp.eq.s32.totalorder %s15, 0
    %p42 = por %p40, %p41
    %s43 = ssub.s32 %s9, %s16
    %p44 = scmp.eq.s32.totalorder %s43, 0
    %s46 = sadd.s32 %s45, 1
    %s47 = scalar_select %p44, %s45, %s46
    %p50 = pneg %p44
    %p51 = scmp.eq.s32.totalorder %s9, 2
    %p52 = por %p50, %p51
    %p53 = scmp.ne.s32.totalorder %s45, %s48
    %p54 = scmp.eq.s32.totalorder %s9, 0
    %p55 = por %p53, %p54
    %p56 = scmp.ne.s32.totalorder %s45, %s48
    %p57 = scmp.eq.s32.totalorder %s14, 2
    %p58 = por %p56, %p57
    %p59 = scmp.ne.s32.totalorder %s48, %s49
    %p60 = scmp.eq.s32.totalorder %s14, 0
    %p61 = por %p59, %p60
    %p62 = scmp.ne.s32.totalorder %s48, %s49
    %p63 = scmp.eq.s32.totalorder %s15, 2
    %p64 = por %p62, %p63
    %p66 = scmp.ne.s32.totalorder %s49, %s65
    %p67 = scmp.eq.s32.totalorder %s15, 0
    %p68 = por %p66, %p67
    %s69 = ssub.s32 %s9, %s16
    %p70 = scmp.eq.s32.totalorder %s69, 0
    %s72 = sadd.s32 %s71, 1
    %s73 = scalar_select %p70, %s71, %s72
    %p76 = pneg %p70
    %p77 = scmp.eq.s32.totalorder %s9, 2
    %p78 = por %p76, %p77
    %p79 = scmp.ne.s32.totalorder %s71, %s74
    %p80 = scmp.eq.s32.totalorder %s9, 0
    %p81 = por %p79, %p80
    %p82 = scmp.ne.s32.totalorder %s71, %s74
    %p83 = scmp.eq.s32.totalorder %s14, 2
    %p84 = por %p82, %p83
    %p85 = scmp.ne.s32.totalorder %s74, %s75
    %p86 = scmp.eq.s32.totalorder %s14, 0
    %p87 = por %p85, %p86
    %p88 = scmp.ne.s32.totalorder %s74, %s75
    %p89 = scmp.eq.s32.totalorder %s15, 2
    %p90 = por %p88, %p89
    %p92 = scmp.ne.s32.totalorder %s75, %s91
    %p93 = scmp.eq.s32.totalorder %s15, 0
    %p94 = por %p92, %p93
    %s95 = ssub.s32 %s9, %s16
    %p96 = scmp.eq.s32.totalorder %s95, 0
    %s98 = sadd.s32 %s97, 1
    %s99 = scalar_select %p96, %s97, %s98
    %p102 = pneg %p96
    %p103 = scmp.eq.s32.totalorder %s9, 2
    %p104 = por %p102, %p103
    %p105 = scmp.ne.s32.totalorder %s97, %s100
    %p106 = scmp.eq.s32.totalorder %s9, 0
    %p107 = por %p105, %p106
    %p108 = scmp.ne.s32.totalorder %s97, %s100
    %p109 = scmp.eq.s32.totalorder %s14, 2
    %p110 = por %p108, %p109
    %p111 = scmp.ne.s32.totalorder %s100, %s101
    %p112 = scmp.eq.s32.totalorder %s14, 0
    %p113 = por %p111, %p112
    %p114 = scmp.ne.s32.totalorder %s100, %s101
    %p115 = scmp.eq.s32.totalorder %s15, 2
    %p116 = por %p114, %p115
    %p118 = scmp.ne.s32.totalorder %s101, %s117
    %p119 = scmp.eq.s32.totalorder %s15, 0
    %p120 = por %p118, %p119
    %p121 = scmp.le.s32.totalorder 1, %s9
    %p122 = scmp.lt.s32.totalorder %s9, 4
    %p123 = pnand %p121, %p122
    %p124 = pneg %p123
    // Predicated region
    $region9: #{tpu_custom_call.1} parent=5 // pred_check
      _
    $region10: #{tpu_custom_call.1} parent=5 // pred_check_branch
      %126 = sbr.rel (%p123) target = $region12
    $region11: #{tpu_custom_call.1} parent=5 // pred_region
      %s127 = ssub.s32 %s9, 1
    $region12: #{tpu_custom_call.1} parent=5 // pred_fallthru
      _
    %p128 = scmp.lt.s32.totalorder %s9, 3
    // Predicated region
    $region13: #{tpu_custom_call.1} parent=5 // pred_check
      %p129 = pneg %p128
    $region14: #{tpu_custom_call.1} parent=5 // pred_check_branch
      %131 = sbr.rel (%p129) target = $region16
    $region15: #{tpu_custom_call.1} parent=5 // pred_region
      // Predicated region
      $region17: #{tpu_custom_call.1} parent=15 // pred_check
        %p132 = pneg %p29
      $region18: #{tpu_custom_call.1} parent=15 // pred_check_branch
        %134 = sbr.rel (%p132) target = $region20
      $region19: #{tpu_custom_call.1} parent=15 // pred_region
        %p135 = scmp.lt.s32.totalorder %s9, 2
        %s136 = scalar_select %p135, %s9, 2
        %s137 = smul.addr %s136, 8
        %s138 = scalar_lea.vmem %s0, %s137
      $region20: #{tpu_custom_call.1} parent=15 // pred_fallthru
        _
      // Predicated region
      $region21: #{tpu_custom_call.1} parent=15 // pred_check
        %p139 = pneg %p55
      $region22: #{tpu_custom_call.1} parent=15 // pred_check_branch
        %141 = sbr.rel (%p139) target = $region24
      $region23: #{tpu_custom_call.1} parent=15 // pred_region
        %p142 = scmp.lt.s32.totalorder %s9, 2
        %s143 = scalar_select %p142, %s9, 2
        %s144 = smul.addr %s143, 8
        %s145 = scalar_lea.vmem %s1, %s144
      $region24: #{tpu_custom_call.1} parent=15 // pred_fallthru
        _
      // Predicated region
      $region25: #{tpu_custom_call.1} parent=15 // pred_check
        %p146 = pneg %p81
      $region26: #{tpu_custom_call.1} parent=15 // pred_check_branch
        %148 = sbr.rel (%p146) target = $region28
      $region27: #{tpu_custom_call.1} parent=15 // pred_region
        %p149 = scmp.lt.s32.totalorder %s9, 2
        %s150 = scalar_select %p149, %s9, 2
        %s151 = smul.addr %s150, 8
        %s152 = scalar_lea.vmem %s2, %s151
      $region28: #{tpu_custom_call.1} parent=15 // pred_fallthru
        _
    $region16: #{tpu_custom_call.1} parent=5 // pred_fallthru
      _
    %p153 = scmp.le.s32.totalorder 1, %s9
    %p154 = scmp.lt.s32.totalorder %s9, 4
    %p155 = pnand %p153, %p154
    %p156 = pneg %p155
    // Predicated region
    $region29: #{tpu_custom_call.1} parent=5 // pred_check
      _
    $region30: #{tpu_custom_call.1} parent=5 // pred_check_branch
      %158 = sbr.rel (%p155) target = $region32
    $region31: #{tpu_custom_call.1} parent=5 // pred_region
      %s159 = ssub.s32 %s9, 1
      %p160 = scmp.lt.s32.totalorder %s14, 2
      %s161 = scalar_select %p160, %s14, 2
      %s162 = smul.addr %s161, 8
      %s163 = scalar_lea.vmem %s0, %s162
      %p164 = pneg %p35
      %p165 = pneg %p32
      %p166 = scmp.lt.s32.totalorder %s14, 2
      %s167 = scalar_select %p166, %s14, 2
      %s168 = smul.addr %s167, 8
      %s169 = scalar_lea.vmem %s1, %s168
      %p170 = pneg %p61
      %p171 = pneg %p58
      %p172 = scmp.lt.s32.totalorder %s14, 2
      %s173 = scalar_select %p172, %s14, 2
      %s174 = smul.addr %s173, 8
      %s175 = scalar_lea.vmem %s2, %s174
      %p176 = pneg %p87
      %p177 = pneg %p84
      %p178 = pneg %p113
      %p179 = pneg %p110
      %p180 = scmp.lt.s32.totalorder %s14, 2
      %s181 = scalar_select %p180, %s14, 2
      %s182 = smul.addr %s181, 8
      %s183 = scalar_lea.vmem %s3, %s182
      %p184 = scmp.lt.s32.totalorder %s14, 2
      %s185 = scalar_select %p184, %s14, 2
      %s186 = smul.addr %s185, 8
      %s187 = scalar_lea.vmem %s0, %s186
      %p188 = scmp.lt.s32.totalorder %s14, 2
      %s189 = scalar_select %p188, %s14, 2
      %s190 = smul.addr %s189, 8
      %s191 = scalar_lea.vmem %s1, %s190
      %p192 = scmp.lt.s32.totalorder %s14, 2
      %s193 = scalar_select %p192, %s14, 2
      %s194 = smul.addr %s193, 8
      %s195 = scalar_lea.vmem %s2, %s194
      %p196 = scmp.lt.s32.totalorder %s14, 2
      %s197 = scalar_select %p196, %s14, 2
      %s198 = smul.addr %s197, 8
      %s199 = scalar_lea.vmem %s3, %s198
      %v200 = vld [vmem:[%s195] sm:$0xff]
      %v201 = vld [vmem:[%s187] sm:$0xff]
      %203 = vset.pattern.permute.xlu0 0
      %204 = vperm.xlu0 %203, %v201
      %v205 = vpop.permute.xlu0 %204
      %v207 = vmul.f32 %v205, %v200
      %v208 = vld [vmem:[%s191] sm:$0xff]
      %210 = vset.pattern.permute.xlu0 0
      %211 = vperm.xlu0 %210, %v208
      %v212 = vpop.permute.xlu0 %211
      %v214 = vadd.f32 %v207, %v212
      %vm215 = vcmask 80896
      %216 = vst.msk [vmem:[%s199] sm:$0xff] %vm215, %v214
      %p217 = scmp.lt.s32.totalorder %s14, 2
      %s218 = scalar_select %p217, %s14, 2
      %s219 = smul.addr %s218, 8
      %s220 = scalar_lea.vmem %s3, %s219
      // Predicated region
      $region33: #{tpu_custom_call.1} parent=31 // pred_check
        %p221 = pneg %p110
      $region34: #{tpu_custom_call.1} parent=31 // pred_check_branch
        %223 = sbr.rel (%p221) target = $region36
      $region35: #{tpu_custom_call.1} parent=31 // pred_region
        _
      $region36: #{tpu_custom_call.1} parent=31 // pred_fallthru
        _
    $region32: #{tpu_custom_call.1} parent=5 // pred_fallthru
      _
    %p224 = scmp.le.s32.totalorder 2, %s9
    // Predicated region
    $region37: #{tpu_custom_call.1} parent=5 // pred_check
      %p225 = pneg %p224
    $region38: #{tpu_custom_call.1} parent=5 // pred_check_branch
      %227 = sbr.rel (%p225) target = $region40
    $region39: #{tpu_custom_call.1} parent=5 // pred_region
      %s228 = ssub.s32 %s9, 2
      // Predicated region
      $region41: #{tpu_custom_call.1} parent=39 // pred_check
        %p229 = pneg %p116
      $region42: #{tpu_custom_call.1} parent=39 // pred_check_branch
        %231 = sbr.rel (%p229) target = $region44
      $region43: #{tpu_custom_call.1} parent=39 // pred_region
        %p232 = scmp.lt.s32.totalorder %s15, 2
        %s233 = scalar_select %p232, %s15, 2
        %s234 = smul.addr %s233, 8
        %s235 = scalar_lea.vmem %s3, %s234
      $region44: #{tpu_custom_call.1} parent=39 // pred_fallthru
        _
    $region40: #{tpu_custom_call.1} parent=5 // pred_fallthru
      _
  $region6: #{tpu_custom_call.1} parent=0 // loop_footer
    %s13 = sadd.s32 1, %s9
  $region7: #{tpu_custom_call.1} parent=0 // loop_footer_branch
    %8 = sbr.rel target = $region3
  $region8: #{tpu_custom_call.1} parent=0 // loop_exit
    _

</llo_original>
